<compile_context>
chip_gen: v5e
topology: v5e:2x2
jax: 0.10.0
libtpu: 0.0.40
codegen_flags: <defaults>
</compile_context>

<pallas_src>
import functools
from typing import NamedTuple

import jax
import jax.numpy as jnp
from jax.experimental import pallas as pl
from jax.experimental.pallas import tpu as pltpu


def _conv_relu_kernel(x_ref, wcat_ref, s_ref, b_ref, o_ref, *, cow):
    # x_ref   : (Mb, c_in*W)      Mb = images_per_block*H lane-dense rows,
    #                             unpadded (padding handled by shift matrices)
    # wcat_ref: (c_in*W, 3*cow)   banded kh=0/1/2 weights concatenated along
    #                             the output-lane axis (compute dtype)
    # s_ref   : (2, Mb, Mb)       f32 0/1 [shift-down, shift-up] matrices,
    #                             block-diagonal per image (fold H zero-pad
    #                             and image boundaries into MXU work)
    # b_ref   : (1, cow)          f32 bias broadcast over W
    # o_ref   : (Mb, cow)         lane-dense output block
    z = jnp.dot(x_ref[...], wcat_ref[...], preferred_element_type=jnp.float32)
    # kh=1 partial needs no shift; kh=0 / kh=2 partials need a +/-1 row shift
    # with zeroed boundary rows == exactly S_down @ z0 / S_up @ z2.
    acc = jnp.broadcast_to(b_ref[...], o_ref.shape) + z[:, cow:2 * cow]
    acc = acc + jnp.dot(s_ref[0], z[:, 0:cow],
                        preferred_element_type=jnp.float32)
    acc = acc + jnp.dot(s_ref[1], z[:, 2 * cow:3 * cow],
                        preferred_element_type=jnp.float32)
    o_ref[...] = jnp.maximum(acc, 0.0).astype(o_ref.dtype)


def _banded_weights(weight, W):
    """(c_out, c_in, 3, 3) OIHW -> (3, c_in*W, c_out*W) banded matrices.

    wk[kh, c*W + p, o*W + j] = weight[o, c, kh, p - j + 1] if 0 <= p-j+1 <= 2
    else 0.  Folds the kw taps AND the width zero-padding into the contraction.
    """
    c_in, c_out = weight.shape[1], weight.shape[0]
    w_hwio = jnp.transpose(weight, (2, 3, 1, 0))            # (3, 3, c_in, c_out)
    p = jnp.arange(W)
    j = jnp.arange(W)
    kw = p[:, None] - j[None, :] + 1                        # (W, W)
    valid = (kw >= 0) & (kw <= 2)
    wk = w_hwio[:, jnp.clip(kw, 0, 2)]                      # (3, p, j, c_in, c_out)
    wk = jnp.where(valid[None, :, :, None, None], wk, 0.0)
    wk = jnp.transpose(wk, (0, 3, 1, 4, 2))                 # (3, c_in, p, c_out, j)
    return wk.reshape(3, c_in * W, c_out * W)


def _shift_matrices(images_per_block, H):
    """0/1 matrices realizing the +/-1 row shifts of the kh=0 / kh=2 taps,
    block-diagonal per image (boundary rows zeroed == SAME zero-padding)."""
    M = images_per_block * H
    m = jnp.arange(M)
    same_image = (m[:, None] // H) == (m[None, :] // H)
    s_down = (same_image & (m[None, :] == m[:, None] - 1)).astype(jnp.float32)
    s_up = (same_image & (m[None, :] == m[:, None] + 1)).astype(jnp.float32)
    return jnp.stack([s_down, s_up], axis=0)                # (2, M, M)


class ConvParams(NamedTuple):
    wcat: jax.Array        # (c_in*W, 3*c_out*W), compute dtype
    shifts: jax.Array      # (2, Mb, Mb), f32
    b_lane: jax.Array      # (1, c_out*W), f32
    c_in: int
    c_out: int
    H: int
    W: int
    images_per_block: int
    compute_dtype: jnp.dtype


def prepare_conv_params(weight, bias, *, H, W, batch, images_per_block=None,
                        compute_dtype=jnp.float32):
    """Once-per-weight-update prep (hoisted out of the forward path).

    On v7x pass images_per_block = batch // 2 so both TensorCores get a
    parallel grid step; on v5e/v6e the default (fewest grid steps) is best.
    """
    c_out, c_in = int(weight.shape[0]), int(weight.shape[1])
    if images_per_block is None:
        # Fewest grid steps while keeping the shift-matrix M modest (<=~256).
        images_per_block = min(batch, max(1, 256 // H))
    images_per_block = max(1, images_per_block)
    while batch % images_per_block:
        images_per_block -= 1

    wk = _banded_weights(weight.astype(jnp.float32), W)      # (3, CW, COW)
    wcat = jnp.transpose(wk, (1, 0, 2)).reshape(c_in * W, 3 * c_out * W)
    wcat = wcat.astype(compute_dtype)
    b_lane = jnp.repeat(bias.astype(jnp.float32), W).reshape(1, c_out * W)
    shifts = _shift_matrices(images_per_block, H)            # exact -> keep f32
    return ConvParams(wcat, shifts, b_lane, c_in, c_out, H, W,
                      images_per_block, compute_dtype)


def conv_relu_lane_dense(x_lane, params: ConvParams, *, out_dtype=None):
    """x_lane: (N, H, c_in*W) lane-dense activations (the layout to keep
    between layers).  Returns (N, H, c_out*W) lane-dense ReLU(conv(x))."""
    N, H, CW = x_lane.shape
    COW = params.c_out * params.W
    ipb = params.images_per_block
    Mb = ipb * H
    out_dtype = x_lane.dtype if out_dtype is None else out_dtype

    x_rows = x_lane.reshape(N * H, CW).astype(params.compute_dtype)  # free view

    out = pl.pallas_call(
        functools.partial(_conv_relu_kernel, cow=COW),
        out_shape=jax.ShapeDtypeStruct((N * H, COW), out_dtype),
        grid_spec=pltpu.PrefetchScalarGridSpec(
            num_scalar_prefetch=0,
            grid=(N // ipb,),
            in_specs=[
                pl.BlockSpec((Mb, CW), lambda i: (i, 0)),
                pl.BlockSpec((CW, 3 * COW), lambda i: (0, 0)),
                pl.BlockSpec((2, Mb, Mb), lambda i: (0, 0, 0)),
                pl.BlockSpec((1, COW), lambda i: (0, 0)),
            ],
            out_specs=pl.BlockSpec((Mb, COW), lambda i: (i, 0)),
        ),
        compiler_params=pltpu.CompilerParams(
            dimension_semantics=("parallel",),
        ),
    )(x_rows, params.wcat, params.shifts, params.b_lane)
    return out.reshape(N, H, COW)


# ---- model-boundary layout helpers (NOT part of the per-layer hot path) ----

def nchw_to_lane(x_nchw, compute_dtype=jnp.float32):
    # NCHW -> (N, H, C*W): only the middle axes swap; minor dim W untouched.
    N, C, H, W = x_nchw.shape
    return (jnp.transpose(x_nchw, (0, 2, 1, 3))
            .reshape(N, H, C * W).astype(compute_dtype))


def lane_to_nchw(x_lane, C):
    N, H, CW = x_lane.shape
    W = CW // C
    return jnp.transpose(x_lane.reshape(N, H, C, W), (0, 2, 1, 3))


def conv_relu_nchw(x_nchw, params: ConvParams, *, out_dtype=None):
    """NCHW convenience wrapper (use only at the model boundary)."""
    out_dtype = x_nchw.dtype if out_dtype is None else out_dtype
    x_lane = nchw_to_lane(x_nchw, params.compute_dtype)
    y_lane = conv_relu_lane_dense(x_lane, params, out_dtype=out_dtype)
    return lane_to_nchw(y_lane, params.c_out)


def _reference(x_nchw, weight, bias):
    y = jax.lax.conv_general_dilated(
        x_nchw, weight, window_strides=(1, 1), padding="SAME",
        dimension_numbers=("NCHW", "OIHW", "NCHW"),
    )
    return jnp.maximum(y + bias[None, :, None, None], 0.0)


if __name__ == "__main__":
    key = jax.random.PRNGKey(0)
    k_x, k_w, k_b = jax.random.split(key, 3)

    N, c_in, c_out, H, W = 2, 4, 8, 16, 16

    x = jax.random.normal(k_x, (N, c_in, H, W), dtype=jnp.float32)
    # Deterministic parameter init (shapes match nn.Conv2d(c_in, c_out, 3)).
    fan_in = c_in * 3 * 3
    bound = 1.0 / (fan_in ** 0.5)
    weight = jax.random.uniform(k_w, (c_out, c_in, 3, 3),
                                minval=-bound, maxval=bound, dtype=jnp.float32)
    bias = jax.random.uniform(k_b, (c_out,),
                              minval=-bound, maxval=bound, dtype=jnp.float32)

    y_ref = _reference(x, weight, bias)

    # f32 operand path, whole batch in a single grid step (v5e/v6e preference).
    p_f32 = prepare_conv_params(weight, bias, H=H, W=W, batch=N,
                                compute_dtype=jnp.float32)
    y = conv_relu_nchw(x, p_f32)
    jax.block_until_ready(y)
    assert y.shape == (N, c_out, H, W)
    assert jnp.allclose(y, y_ref, atol=1e-5, rtol=1e-5)

    # bf16 MXU operands (f32 accumulation / bias / ReLU): recommended on
    # v5e, v6e and v7x -- halves HBM/VMEM bytes for x and the banded weights.
    p_bf16 = prepare_conv_params(weight, bias, H=H, W=W, batch=N,
                                 compute_dtype=jnp.bfloat16)
    y_bf16 = conv_relu_nchw(x, p_bf16)
    jax.block_until_ready(y_bf16)
    assert jnp.allclose(y_bf16, y_ref, atol=5e-2, rtol=5e-2)

    # v7x-friendly blocking: two parallel grid steps so both TensorCores work.
    p_2step = prepare_conv_params(weight, bias, H=H, W=W, batch=N,
                                  images_per_block=max(1, N // 2),
                                  compute_dtype=jnp.float32)
    y_2 = conv_relu_nchw(x, p_2step)
    jax.block_until_ready(y_2)
    assert jnp.allclose(y_2, y_ref, atol=1e-5, rtol=1e-5)

    print("KERNEL_OK")
</pallas_src>

<mosaic_0001>
module attributes {stable_mosaic.version = 11 : i64} {
  func.func @_conv_relu_kernel(%arg0: i32, %arg1: memref<32x64xf32, #tpu.memory_space<vmem>>, %arg2: memref<64x384xf32, #tpu.memory_space<vmem>>, %arg3: memref<2x32x32xf32, #tpu.memory_space<vmem>>, %arg4: memref<1x128xf32, #tpu.memory_space<vmem>>, %arg5: memref<32x128xf32, #tpu.memory_space<vmem>>) attributes {dimension_semantics = [#tpu.dimension_semantics<parallel>], iteration_bounds = array<i64: 1>, scalar_prefetch = 0 : i64, scratch_operands = 0 : i64, tpu.core_type = #tpu.core_type<tc>, window_params = [{transform_indices = @transform_0, window_bounds = array<i64: 32, 64>}, {pipeline_mode = #tpu.pipeline_mode<synchronous>, transform_indices = @transform_1, window_bounds = array<i64: 64, 384>}, {pipeline_mode = #tpu.pipeline_mode<synchronous>, transform_indices = @transform_2, window_bounds = array<i64: 2, 32, 32>}, {pipeline_mode = #tpu.pipeline_mode<synchronous>, transform_indices = @transform_3, window_bounds = array<i64: 1, 128>}, {transform_indices = @transform_4, window_bounds = array<i64: 32, 128>}]} {
    %c0 = arith.constant 0 : index
    %c0_0 = arith.constant 0 : index
    %0 = vector.load %arg1[%c0, %c0_0] : memref<32x64xf32, #tpu.memory_space<vmem>>, vector<32x64xf32>
    %c0_1 = arith.constant 0 : index
    %c0_2 = arith.constant 0 : index
    %1 = vector.load %arg2[%c0_1, %c0_2] : memref<64x384xf32, #tpu.memory_space<vmem>>, vector<64x384xf32>
    %cst = arith.constant dense<0.000000e+00> : vector<32x384xf32>
    %2 = tpu.matmul %0, %1, %cst {dimension_numbers = #tpu.dot_dimension_numbers<[1], [0], [0], [1], [0, 0, 1, 1], [], []>} : vector<32x64xf32>, vector<64x384xf32>, vector<32x384xf32> -> vector<32x384xf32>
    %c0_3 = arith.constant 0 : index
    %c0_4 = arith.constant 0 : index
    %3 = vector.load %arg4[%c0_3, %c0_4] : memref<1x128xf32, #tpu.memory_space<vmem>>, vector<1x128xf32>
    %4 = vector.shape_cast %3 : vector<1x128xf32> to vector<1x128xf32>
    %5 = vector.broadcast %4 : vector<1x128xf32> to vector<32x128xf32>
    %6 = vector.extract_strided_slice %2 {offsets = [0, 128], sizes = [32, 128], strides = [1, 1]} : vector<32x384xf32> to vector<32x128xf32>
    %7 = arith.addf %5, %6 : vector<32x128xf32>
    %c0_5 = arith.constant 0 : index
    %c0_6 = arith.constant 0 : index
    %c0_7 = arith.constant 0 : index
    %8 = vector.load %arg3[%c0_5, %c0_6, %c0_7] : memref<2x32x32xf32, #tpu.memory_space<vmem>>, vector<1x32x32xf32>
    %9 = vector.shape_cast %8 : vector<1x32x32xf32> to vector<32x32xf32>
    %10 = vector.extract_strided_slice %2 {offsets = [0, 0], sizes = [32, 128], strides = [1, 1]} : vector<32x384xf32> to vector<32x128xf32>
    %cst_8 = arith.constant dense<0.000000e+00> : vector<32x128xf32>
    %11 = tpu.matmul %9, %10, %cst_8 {dimension_numbers = #tpu.dot_dimension_numbers<[1], [0], [0], [1], [0, 0, 1, 1], [], []>} : vector<32x32xf32>, vector<32x128xf32>, vector<32x128xf32> -> vector<32x128xf32>
    %12 = arith.addf %7, %11 : vector<32x128xf32>
    %c1 = arith.constant 1 : index
    %c0_9 = arith.constant 0 : index
    %c0_10 = arith.constant 0 : index
    %13 = vector.load %arg3[%c1, %c0_9, %c0_10] : memref<2x32x32xf32, #tpu.memory_space<vmem>>, vector<1x32x32xf32>
    %14 = vector.shape_cast %13 : vector<1x32x32xf32> to vector<32x32xf32>
    %15 = vector.extract_strided_slice %2 {offsets = [0, 256], sizes = [32, 128], strides = [1, 1]} : vector<32x384xf32> to vector<32x128xf32>
    %cst_11 = arith.constant dense<0.000000e+00> : vector<32x128xf32>
    %16 = tpu.matmul %14, %15, %cst_11 {dimension_numbers = #tpu.dot_dimension_numbers<[1], [0], [0], [1], [0, 0, 1, 1], [], []>} : vector<32x32xf32>, vector<32x128xf32>, vector<32x128xf32> -> vector<32x128xf32>
    %17 = arith.addf %12, %16 : vector<32x128xf32>
    %cst_12 = arith.constant 0.000000e+00 : f32
    %18 = vector.broadcast %cst_12 : f32 to vector<32x128xf32>
    %19 = arith.maximumf %17, %18 : vector<32x128xf32>
    %c0_13 = arith.constant 0 : index
    %c0_14 = arith.constant 0 : index
    %20 = vector.load %arg5[%c0_13, %c0_14] : memref<32x128xf32, #tpu.memory_space<vmem>>, vector<32x128xf32>
    tpu.vector_store %arg5[%c0_13, %c0_14], %19 {strides = array<i32>} : memref<32x128xf32, #tpu.memory_space<vmem>>, vector<32x128xf32>,
    return
  }
  func.func @transform_0(%arg0: i32) -> (i32, i32) {
    %c0_i32 = arith.constant 0 : i32
    %c0_i32_0 = arith.constant 0 : i32
    return %arg0, %c0_i32 : i32, i32
  }
  func.func @transform_1(%arg0: i32) -> (i32, i32) {
    %c0_i32 = arith.constant 0 : i32
    %c0_i32_0 = arith.constant 0 : i32
    %c0_i32_1 = arith.constant 0 : i32
    return %c0_i32, %c0_i32_0 : i32, i32
  }
  func.func @transform_2(%arg0: i32) -> (i32, i32, i32) {
    %c0_i32 = arith.constant 0 : i32
    %c0_i32_0 = arith.constant 0 : i32
    %c0_i32_1 = arith.constant 0 : i32
    %c0_i32_2 = arith.constant 0 : i32
    return %c0_i32, %c0_i32_0, %c0_i32_1 : i32, i32, i32
  }
  func.func @transform_3(%arg0: i32) -> (i32, i32) {
    %c0_i32 = arith.constant 0 : i32
    %c0_i32_0 = arith.constant 0 : i32
    %c0_i32_1 = arith.constant 0 : i32
    return %c0_i32, %c0_i32_0 : i32, i32
  }
  func.func @transform_4(%arg0: i32) -> (i32, i32) {
    %c0_i32 = arith.constant 0 : i32
    %c0_i32_0 = arith.constant 0 : i32
    return %arg0, %c0_i32 : i32, i32
  }
}

</mosaic_0001>

<llo_original>
// kernel: tpu_custom_call.1
$region0: #{tpu_custom_call.1}
  #allocation0 [shape = 'u32[]', space=smem, size = 0x4, offset = 0x4, fixed_abs, tag = 'smem constant byte address 0x4 - core index']
  #allocation1 [shape = 'u32[72,128]{1,0:T(1,128)}', space=vmem, size = 0x9000, scoped, tag = 'internal scratch']
  %s0 = inlined_call_operand.hbm [shape: f32[32,64], index: 0, kind: input, shape index: {}]
  %s1 = inlined_call_operand.hbm [shape: f32[64,384], index: 1, kind: input, shape index: {}]
  %s2 = inlined_call_operand.hbm [shape: f32[2,32,32], index: 2, kind: input, shape index: {}]
  %s3 = inlined_call_operand.vmem [shape: f32[1,128], index: 3, kind: input, shape index: {}]
  %s4 = inlined_call_operand.hbm [shape: f32[32,128], index: 4, kind: output, shape index: {}]
  %s5 = sld [smem:[#allocation0]]
  $region38: #{tpu_custom_call.1} parent=0
    _
  %s7 = ssub.s32 1, %s5
  %s8 = scalar_select 0, %s7, %s5
  $region1: #{tpu_custom_call.1} parent=0
    #allocation2 [shape = 'u8[16384]{0}', space=vmem, size = 0x4000, scoped, tag = 'input window, operand 0, single buffered']
    #allocation3 [shape = 's32[1]{0}', space=sflag, size = 0x4, scoped, tag = 'scoped memory for tpu_custom_call.1']
    #allocation4 [shape = 's32[1]{0}', space=sflag, size = 0x4, scoped, tag = 'scoped memory for tpu_custom_call.1']
    #allocation5 [shape = 'u8[98304]{0}', space=vmem, size = 0x18000, scoped, tag = 'input window, operand 1, single buffered']
    #allocation6 [shape = 's32[1]{0}', space=sflag, size = 0x4, scoped, tag = 'scoped memory for tpu_custom_call.1']
    #allocation7 [shape = 'u8[32768]{0}', space=vmem, size = 0x8000, scoped, tag = 'input window, operand 2, single buffered']
    #allocation8 [shape = 'u8[16384]{0}', space=vmem, size = 0x4000, scoped, tag = 'output window, operand 0, single buffered']
    %9 = vsyncpa [#allocation3], 0
    %10 = vsyncpa [#allocation6], 0
    %11 = vsyncpa [#allocation4], 0
    // Predicated region
    $region2: #{tpu_custom_call.1} parent=1 // pred_check
      _
    $region3: #{tpu_custom_call.1} parent=1 // pred_check_branch
      %13 = sbr.rel (0) target = $region5
    $region4: #{tpu_custom_call.1} parent=1 // pred_region
      %15 = vsyncadd [#allocation3], 0
      %s16 = sshll.u32 %s0, 4
      %s17 = int_to_ptr.hbm [resolvable:$true] %s16
      %s18 = sshll.u32 [#allocation2], 4
      %s19 = int_to_ptr.vmem [resolvable:$true] %s18
      %24 = dma.hbm_to_vmem [thread:$0]  %s17, 512, %s19, [#allocation3], 128, 128, 8
    $region5: #{tpu_custom_call.1} parent=1 // pred_fallthru
      _
    // Predicated region
    $region6: #{tpu_custom_call.1} parent=1 // pred_check
      _
    $region7: #{tpu_custom_call.1} parent=1 // pred_check_branch
      %26 = sbr.rel (0) target = $region9
    $region8: #{tpu_custom_call.1} parent=1 // pred_region
      %28 = vsyncadd [#allocation6], 0
      %s29 = sshll.u32 %s1, 4
      %s30 = int_to_ptr.hbm [resolvable:$true] %s29
      %s31 = sshll.u32 [#allocation5], 4
      %s32 = int_to_ptr.vmem [resolvable:$true] %s31
      %37 = dma.hbm_to_vmem [thread:$0]  %s30, 3072, %s32, [#allocation6], 384, 384, 24
    $region9: #{tpu_custom_call.1} parent=1 // pred_fallthru
      _
    // Predicated region
    $region10: #{tpu_custom_call.1} parent=1 // pred_check
      _
    $region11: #{tpu_custom_call.1} parent=1 // pred_check_branch
      %39 = sbr.rel (0) target = $region13
    $region12: #{tpu_custom_call.1} parent=1 // pred_region
      %41 = vsyncadd [#allocation6], 0
      %s42 = sshll.u32 %s2, 4
      %s43 = int_to_ptr.hbm [resolvable:$true] %s42
      %s44 = sshll.u32 [#allocation7], 4
      %s45 = int_to_ptr.vmem [resolvable:$true] %s44
      %50 = dma.hbm_to_vmem [thread:$0]  %s43, 1024, %s45, [#allocation6], 128, 128, 8
    $region13: #{tpu_custom_call.1} parent=1 // pred_fallthru
      _
    // Predicated region
    $region14: #{tpu_custom_call.1} parent=1 // pred_check
      _
    $region15: #{tpu_custom_call.1} parent=1 // pred_check_branch
      %52 = sbr.rel (0) target = $region17
    $region16: #{tpu_custom_call.1} parent=1 // pred_region
      _
    $region17: #{tpu_custom_call.1} parent=1 // pred_fallthru
      _
    // Predicated region
    $region18: #{tpu_custom_call.1} parent=1 // pred_check
      _
    $region19: #{tpu_custom_call.1} parent=1 // pred_check_branch
      %54 = sbr.rel (0) target = $region21
    $region20: #{tpu_custom_call.1} parent=1 // pred_region
      %56 = dma.done [#allocation3], 512
    $region21: #{tpu_custom_call.1} parent=1 // pred_fallthru
      _
    // Predicated region
    $region22: #{tpu_custom_call.1} parent=1 // pred_check
      _
    $region23: #{tpu_custom_call.1} parent=1 // pred_check_branch
      %58 = sbr.rel (0) target = $region25
    $region24: #{tpu_custom_call.1} parent=1 // pred_region
      %60 = dma.done [#allocation6], 3072
    $region25: #{tpu_custom_call.1} parent=1 // pred_fallthru
      _
    // Predicated region
    $region26: #{tpu_custom_call.1} parent=1 // pred_check
      _
    $region27: #{tpu_custom_call.1} parent=1 // pred_check_branch
      %62 = sbr.rel (0) target = $region29
    $region28: #{tpu_custom_call.1} parent=1 // pred_region
      %64 = dma.done [#allocation6], 1024
    $region29: #{tpu_custom_call.1} parent=1 // pred_fallthru
      _
    %v65 = vld [vmem:[#allocation2] sm:$0xff]
    %v66 = vld [vmem:[#allocation2 + $0x8] sm:$0xff]
    %v67 = vld [vmem:[#allocation2 + $0x10] sm:$0xff]
    %v68 = vld [vmem:[#allocation2 + $0x18] sm:$0xff]
    %v69 = vld [vmem:[#allocation5] sm:$0xff]
    %v70 = vld [vmem:[#allocation5 + $0x8] sm:$0xff]
    %v71 = vld [vmem:[#allocation5 + $0x10] sm:$0xff]
    %v72 = vld [vmem:[#allocation5 + $0x18] sm:$0xff]
    %v73 = vld [vmem:[#allocation5 + $0x20] sm:$0xff]
    %v74 = vld [vmem:[#allocation5 + $0x28] sm:$0xff]
    %v75 = vld [vmem:[#allocation5 + $0x30] sm:$0xff]
    %v76 = vld [vmem:[#allocation5 + $0x38] sm:$0xff]
    %v77 = vld [vmem:[#allocation5 + $0x40] sm:$0xff]
    %v78 = vld [vmem:[#allocation5 + $0x48] sm:$0xff]
    %v79 = vld [vmem:[#allocation5 + $0x50] sm:$0xff]
    %v80 = vld [vmem:[#allocation5 + $0x58] sm:$0xff]
    %v81 = vld [vmem:[#allocation5 + $0x60] sm:$0xff]
    %v82 = vld [vmem:[#allocation5 + $0x68] sm:$0xff]
    %v83 = vld [vmem:[#allocation5 + $0x70] sm:$0xff]
    %v84 = vld [vmem:[#allocation5 + $0x78] sm:$0xff]
    %v85 = vld [vmem:[#allocation5 + $0x80] sm:$0xff]
    %v86 = vld [vmem:[#allocation5 + $0x88] sm:$0xff]
    %v87 = vld [vmem:[#allocation5 + $0x90] sm:$0xff]
    %v88 = vld [vmem:[#allocation5 + $0x98] sm:$0xff]
    %v89 = vld [vmem:[#allocation5 + $0xa0] sm:$0xff]
    %v90 = vld [vmem:[#allocation5 + $0xa8] sm:$0xff]
    %v91 = vld [vmem:[#allocation5 + $0xb0] sm:$0xff]
    %v92 = vld [vmem:[#allocation5 + $0xb8] sm:$0xff]
    %vm93 = vcmask 523264
    %v95 = vsel %vm93, %v65, 0
    %v98 = vsel %vm93, %v66, 0
    %v101 = vsel %vm93, %v67, 0
    %v104 = vsel %vm93, %v68, 0
    %106 = vmatpush.msra.mxu0 0.0
    %107 = vmatpush.msra.mxu0 0.0
    %108 = vmatpush.msra.mxu0 0.0
    %109 = vmatpush.msra.mxu0 0.0
    %110 = vmatpush.msra.mxu0 0.0
    %111 = vmatpush.msra.mxu0 0.0
    %112 = vmatpush.msra.mxu0 0.0
    %113 = vmatpush.msra.mxu0 0.0
    %114 = vmatpush.msra.mxu0 %v90
    %115 = vmatpush.msra.mxu0 %v87
    %116 = vmatpush.msra.mxu0 %v84
    %117 = vmatpush.msra.mxu0 %v81
    %118 = vmatpush.msra.mxu0 %v78
    %119 = vmatpush.msra.mxu0 %v75
    %120 = vmatpush.msra.mxu0 %v72
    %121 = vmatpush.msra.mxu0 %v69
    %122 = vmatmul.f32.gmra.mxu0 %v95
    %v123 = vpop.f32.mrf.mxu0
    %v124 = vadd.f32 0.0, %v123
    %125 = vmatmul.f32.gmra.mxu0 %v98
    %v126 = vpop.f32.mrf.mxu0
    %v127 = vadd.f32 0.0, %v126
    %128 = vmatmul.f32.gmra.mxu0 %v101
    %v129 = vpop.f32.mrf.mxu0
    %v130 = vadd.f32 0.0, %v129
    %131 = vmatmul.f32.gmra.mxu0 %v104
    %v132 = vpop.f32.mrf.mxu0
    %v133 = vadd.f32 0.0, %v132
    %134 = vdwg.mxu0
    %135 = vmatpush.msra.mxu0 0.0
    %136 = vmatpush.msra.mxu0 0.0
    %137 = vmatpush.msra.mxu0 0.0
    %138 = vmatpush.msra.mxu0 0.0
    %139 = vmatpush.msra.mxu0 0.0
    %140 = vmatpush.msra.mxu0 0.0
    %141 = vmatpush.msra.mxu0 0.0
    %142 = vmatpush.msra.mxu0 0.0
    %143 = vmatpush.msra.mxu0 %v91
    %144 = vmatpush.msra.mxu0 %v88
    %145 = vmatpush.msra.mxu0 %v85
    %146 = vmatpush.msra.mxu0 %v82
    %147 = vmatpush.msra.mxu0 %v79
    %148 = vmatpush.msra.mxu0 %v76
    %149 = vmatpush.msra.mxu0 %v73
    %150 = vmatpush.msra.mxu0 %v70
    %151 = vmatmul.f32.gmra.mxu0 %v95
    %v152 = vpop.f32.mrf.mxu0
    %v153 = vadd.f32 0.0, %v152
    %154 = vmatmul.f32.gmra.mxu0 %v98
    %v155 = vpop.f32.mrf.mxu0
    %v156 = vadd.f32 0.0, %v155
    %157 = vmatmul.f32.gmra.mxu0 %v101
    %v158 = vpop.f32.mrf.mxu0
    %v159 = vadd.f32 0.0, %v158
    %160 = vmatmul.f32.gmra.mxu0 %v104
    %v161 = vpop.f32.mrf.mxu0
    %v162 = vadd.f32 0.0, %v161
    %163 = vdwg.mxu0
    %164 = vmatpush.msra.mxu0 0.0
    %165 = vmatpush.msra.mxu0 0.0
    %166 = vmatpush.msra.mxu0 0.0
    %167 = vmatpush.msra.mxu0 0.0
    %168 = vmatpush.msra.mxu0 0.0
    %169 = vmatpush.msra.mxu0 0.0
    %170 = vmatpush.msra.mxu0 0.0
    %171 = vmatpush.msra.mxu0 0.0
    %172 = vmatpush.msra.mxu0 %v92
    %173 = vmatpush.msra.mxu0 %v89
    %174 = vmatpush.msra.mxu0 %v86
    %175 = vmatpush.msra.mxu0 %v83
    %176 = vmatpush.msra.mxu0 %v80
    %177 = vmatpush.msra.mxu0 %v77
    %178 = vmatpush.msra.mxu0 %v74
    %179 = vmatpush.msra.mxu0 %v71
    %180 = vmatmul.f32.gmra.mxu0 %v95
    %v181 = vpop.f32.mrf.mxu0
    %v182 = vadd.f32 0.0, %v181
    %183 = vmatmul.f32.gmra.mxu0 %v98
    %v184 = vpop.f32.mrf.mxu0
    %v185 = vadd.f32 0.0, %v184
    %186 = vmatmul.f32.gmra.mxu0 %v101
    %v187 = vpop.f32.mrf.mxu0
    %v188 = vadd.f32 0.0, %v187
    %189 = vmatmul.f32.gmra.mxu0 %v104
    %v190 = vpop.f32.mrf.mxu0
    %v191 = vadd.f32 0.0, %v190
    %192 = vdwg.mxu0
    %v193 = vld [vmem:[%s3] sm:$0x1]
    %v195 = vperm.slane %v193, 0
    %v197 = vadd.f32 %v195, %v153
    %v198 = vadd.f32 %v195, %v156
    %v199 = vadd.f32 %v195, %v159
    %v200 = vadd.f32 %v195, %v162
    %v201 = vld [vmem:[#allocation7] sm:$0xff]
    %v202 = vld [vmem:[#allocation7 + $0x8] sm:$0xff]
    %v203 = vld [vmem:[#allocation7 + $0x10] sm:$0xff]
    %v204 = vld [vmem:[#allocation7 + $0x18] sm:$0xff]
    %vm205 = vcmask 261120
    %v207 = vsel %vm205, %v201, 0
    %v210 = vsel %vm205, %v202, 0
    %v213 = vsel %vm205, %v203, 0
    %v216 = vsel %vm205, %v204, 0
    %218 = vmatpush.msra.mxu0 0.0
    %219 = vmatpush.msra.mxu0 0.0
    %220 = vmatpush.msra.mxu0 0.0
    %221 = vmatpush.msra.mxu0 0.0
    %222 = vmatpush.msra.mxu0 0.0
    %223 = vmatpush.msra.mxu0 0.0
    %224 = vmatpush.msra.mxu0 0.0
    %225 = vmatpush.msra.mxu0 0.0
    %226 = vmatpush.msra.mxu0 0.0
    %227 = vmatpush.msra.mxu0 0.0
    %228 = vmatpush.msra.mxu0 0.0
    %229 = vmatpush.msra.mxu0 0.0
    %230 = vmatpush.msra.mxu0 %v133
    %231 = vmatpush.msra.mxu0 %v130
    %232 = vmatpush.msra.mxu0 %v127
    %233 = vmatpush.msra.mxu0 %v124
    %234 = vmatmul.f32.gmra.mxu0 %v207
    %v235 = vpop.f32.mrf.mxu0
    %v236 = vadd.f32 0.0, %v235
    %237 = vmatmul.f32.gmra.mxu0 %v210
    %v238 = vpop.f32.mrf.mxu0
    %v239 = vadd.f32 0.0, %v238
    %240 = vmatmul.f32.gmra.mxu0 %v213
    %v241 = vpop.f32.mrf.mxu0
    %v242 = vadd.f32 0.0, %v241
    %243 = vmatmul.f32.gmra.mxu0 %v216
    %v244 = vpop.f32.mrf.mxu0
    %v245 = vadd.f32 0.0, %v244
    %246 = vdwg.mxu0
    %v247 = vadd.f32 %v197, %v236
    %v248 = vadd.f32 %v198, %v239
    %v249 = vadd.f32 %v199, %v242
    %v250 = vadd.f32 %v200, %v245
    %s251 = scalar_lea.vmem [#allocation7], 32
    %v252 = vld [vmem:[%s251] sm:$0xff]
    %v253 = vld [vmem:[%s251 + $0x8] sm:$0xff]
    %v254 = vld [vmem:[%s251 + $0x10] sm:$0xff]
    %v255 = vld [vmem:[%s251 + $0x18] sm:$0xff]
    %v257 = vsel %vm205, %v252, 0
    %v260 = vsel %vm205, %v253, 0
    %v263 = vsel %vm205, %v254, 0
    %v266 = vsel %vm205, %v255, 0
    %268 = vmatpush.msra.mxu0 0.0
    %269 = vmatpush.msra.mxu0 0.0
    %270 = vmatpush.msra.mxu0 0.0
    %271 = vmatpush.msra.mxu0 0.0
    %272 = vmatpush.msra.mxu0 0.0
    %273 = vmatpush.msra.mxu0 0.0
    %274 = vmatpush.msra.mxu0 0.0
    %275 = vmatpush.msra.mxu0 0.0
    %276 = vmatpush.msra.mxu0 0.0
    %277 = vmatpush.msra.mxu0 0.0
    %278 = vmatpush.msra.mxu0 0.0
    %279 = vmatpush.msra.mxu0 0.0
    %280 = vmatpush.msra.mxu0 %v191
    %281 = vmatpush.msra.mxu0 %v188
    %282 = vmatpush.msra.mxu0 %v185
    %283 = vmatpush.msra.mxu0 %v182
    %284 = vmatmul.f32.gmra.mxu0 %v257
    %v285 = vpop.f32.mrf.mxu0
    %v286 = vadd.f32 0.0, %v285
    %287 = vmatmul.f32.gmra.mxu0 %v260
    %v288 = vpop.f32.mrf.mxu0
    %v289 = vadd.f32 0.0, %v288
    %290 = vmatmul.f32.gmra.mxu0 %v263
    %v291 = vpop.f32.mrf.mxu0
    %v292 = vadd.f32 0.0, %v291
    %293 = vmatmul.f32.gmra.mxu0 %v266
    %v294 = vpop.f32.mrf.mxu0
    %v295 = vadd.f32 0.0, %v294
    %296 = vdwg.mxu0
    %v297 = vadd.f32 %v247, %v286
    %v298 = vadd.f32 %v248, %v289
    %v299 = vadd.f32 %v249, %v292
    %v300 = vadd.f32 %v250, %v295
    %v301 = vmax.f32 %v297, 0.0
    %v302 = vmax.f32 %v298, 0.0
    %v303 = vmax.f32 %v299, 0.0
    %v304 = vmax.f32 %v300, 0.0
    %305 = vst [vmem:[#allocation8] sm:$0xff] %v301
    %306 = vst [vmem:[#allocation8 + $0x8] sm:$0xff] %v302
    %307 = vst [vmem:[#allocation8 + $0x10] sm:$0xff] %v303
    %308 = vst [vmem:[#allocation8 + $0x18] sm:$0xff] %v304
    // Predicated region
    $region30: #{tpu_custom_call.1} parent=1 // pred_check
      _
    $region31: #{tpu_custom_call.1} parent=1 // pred_check_branch
      %310 = sbr.rel (0) target = $region33
    $region32: #{tpu_custom_call.1} parent=1 // pred_region
      %312 = vsyncadd [#allocation4], 0
      %s313 = sshll.u32 [#allocation8], 4
      %s314 = int_to_ptr.vmem [resolvable:$true] %s313
      %s315 = sshll.u32 %s4, 4
      %s316 = int_to_ptr.hbm [resolvable:$true] %s315
      %321 = dma.vmem_to_hbm [thread:$0]  %s314, 512, %s316, [#allocation4], 128, 128, 8
    $region33: #{tpu_custom_call.1} parent=1 // pred_fallthru
      _
    // Predicated region
    $region34: #{tpu_custom_call.1} parent=1 // pred_check
      _
    $region35: #{tpu_custom_call.1} parent=1 // pred_check_branch
      %323 = sbr.rel (0) target = $region37
    $region36: #{tpu_custom_call.1} parent=1 // pred_region
      %325 = dma.done [#allocation4], 512
    $region37: #{tpu_custom_call.1} parent=1 // pred_fallthru
      _
    %326 = vsyncpa [#allocation3], 1
    %327 = vsyncpa [#allocation6], 1
    %328 = vsyncpa [#allocation4], 1

</llo_original>
